<compile_context>
chip_gen: v7x
topology: tpu7x:2x2x1
jax: 0.10.0
libtpu: 0.0.40
codegen_flags: <defaults>
</compile_context>

<pallas_src>
import jax
import jax.numpy as jnp
from jax.experimental import pallas as pl
from jax.experimental.pallas import tpu as pltpu

EPS = 1e-6


def _round_up(x, m):
    return ((x + m - 1) // m) * m


def _cdiv(a, b):
    return (a + b - 1) // b


def _tpu_vmem_capacity_bytes():
    """Physical VMEM per core; conservative 64 MiB fallback (v7x) if the query fails."""
    try:
        info = pltpu.get_tpu_info()
        cap = getattr(info, "vmem_capacity_bytes", None)
        if cap:
            return int(cap)
    except Exception:
        pass
    return 64 * 1024 * 1024


def _make_kernel(tn, n_blocks):
    def kernel(x_ref, gamma_ref, beta_ref, w_ref, b_ref, o_ref):
        # x tile: (TR, H). LN / residual math in f32; only MXU operands bf16.
        x = x_ref[...].astype(jnp.float32)
        h = x.shape[-1]

        # --- LayerNorm (torch semantics: unbiased std, eps added to std) ---
        mean = jnp.mean(x, axis=-1, keepdims=True)                 # (TR, 1)
        centered = x - mean
        var_unbiased = jnp.sum(centered * centered, axis=-1, keepdims=True) * (1.0 / (h - 1))
        std = jnp.sqrt(var_unbiased)
        inv_std = pl.reciprocal(std + EPS, approx=True)            # EUP slot; VALU stays free
        scale = gamma_ref[...] * inv_std                           # fold gamma into the scale
        normed = centered * scale + beta_ref[...]                  # one multiply-add per element
        # (Optional v5e micro-opt: gamma/beta could be folded into W/b offline
        #  at weight-load time; kept explicit here to mirror the module params.)

        # --- sublayer: Linear slice (H -> tn) on the MXU, bf16 x bf16 -> f32 acc ---
        sub = jnp.dot(normed.astype(jnp.bfloat16), w_ref[...],
                      preferred_element_type=jnp.float32)          # (TR, tn)

        # --- residual slice of x matching this output-column block ---
        if n_blocks == 1:
            x_res = x
        else:
            j = pl.program_id(1)
            off = pl.multiple_of(j * tn, 128)                      # tn % 128 == 0 on this path
            x_res = x_ref[:, pl.ds(off, tn)].astype(jnp.float32)

        # --- dropout (eval mode => identity) + residual, bias folded into add chain ---
        # TODO(synk): training-mode dropout masking (pltpu.prng_*) not implemented;
        # forward is evaluated in inference mode.
        o_ref[...] = (x_res + sub + b_ref[...]).astype(o_ref.dtype)

    return kernel


def residual_skip_connection_with_layernorm(x, gamma, beta, w, b, *, tile_rows=None):
    """x: (B, S, H). gamma/beta/b: (H,). w: (H, H), ideally pre-stored as bf16.

    Rows (B*S) are tiled along a 'parallel' grid axis; the boundary block (when
    R % tr != 0) is masked by Pallas, so no wrapper-side padding pass over x.
    For H >= 2048 the weight's output dim is split on a second grid axis so the
    bf16 W block stays bounded in VMEM (x stays resident across that axis).
    """
    B, S, H = x.shape
    R = B * S
    x2d = x.reshape(R, H)

    x_item = jnp.dtype(x.dtype).itemsize
    out_item = x_item

    vmem_cap = _tpu_vmem_capacity_bytes()
    vmem_budget = int(0.80 * vmem_cap)

    if tile_rows is None:
        # ~1024 rows on 128-MiB-VMEM parts (v5e/v6e), ~512 on 64-MiB parts (v7x).
        tile_rows = 1024 if vmem_cap >= 96 * 1024 * 1024 else 512

    # Split W's output (N) dim only for large H; tn must then be a multiple of 128.
    if H >= 2048 and H % 512 == 0:
        tn = 512
    else:
        tn = H
    n_blocks = H // tn

    # Keep >= 2 row blocks when possible so the 'parallel' row axis can shard
    # across both TensorCores on v7x (single-TC chips are unaffected).
    min_row_blocks = 2 if R > 8 else 1
    tr = min(_round_up(tile_rows, 8), _round_up(_cdiv(R, min_row_blocks), 8))
    tr = max(tr, 8)

    def vmem_needed(tr_):
        w_bufs = 1 if n_blocks == 1 else 2          # constant block index -> single buffer
        bias_bufs = 1 if n_blocks == 1 else 2
        pipeline = (2 * tr_ * H * x_item            # x tiles (double-buffered)
                    + 2 * tr_ * tn * out_item       # out tiles (double-buffered)
                    + w_bufs * H * tn * 2           # bf16 W block(s)
                    + 2 * H * 4                     # gamma, beta (single-buffered)
                    + bias_bufs * tn * 4)           # bias
        temporaries = (3 * tr_ * H * 4              # x(f32), centered, normed
                       + tr_ * H * 2                # bf16 copy of normed
                       + tr_ * tn * 4)              # f32 matmul result
        return int(1.25 * (pipeline + temporaries))  # headroom

    while tr > 8 and vmem_needed(tr) > vmem_budget:
        tr = _round_up(tr // 2, 8)

    vmem_limit = int(min(max(vmem_needed(tr), 32 * 1024 * 1024), max(vmem_budget, 32 * 1024 * 1024)))

    gamma2d = gamma.reshape(1, H).astype(jnp.float32)
    beta2d = beta.reshape(1, H).astype(jnp.float32)
    b2d = b.reshape(1, H).astype(jnp.float32)
    # W should already be bf16 (cast once at weight-load time); no-op if so.
    w_bf16 = w if w.dtype == jnp.bfloat16 else w.astype(jnp.bfloat16)

    row_blocks = _cdiv(R, tr)

    if n_blocks == 1:
        grid = (row_blocks,)
        in_specs = [
            pl.BlockSpec((tr, H), lambda i: (i, 0)),                                        # x rows
            pl.BlockSpec((1, H), lambda i: (0, 0), pipeline_mode=pl.Buffered(1)),           # gamma
            pl.BlockSpec((1, H), lambda i: (0, 0), pipeline_mode=pl.Buffered(1)),           # beta
            pl.BlockSpec((H, H), lambda i: (0, 0), pipeline_mode=pl.Buffered(1)),           # W
            pl.BlockSpec((1, H), lambda i: (0, 0), pipeline_mode=pl.Buffered(1)),           # bias
        ]
        out_specs = pl.BlockSpec((tr, H), lambda i: (i, 0))
        dim_sem = ("parallel",)
    else:
        grid = (row_blocks, n_blocks)
        in_specs = [
            pl.BlockSpec((tr, H), lambda i, j: (i, 0)),                                     # x resident over j
            pl.BlockSpec((1, H), lambda i, j: (0, 0), pipeline_mode=pl.Buffered(1)),        # gamma
            pl.BlockSpec((1, H), lambda i, j: (0, 0), pipeline_mode=pl.Buffered(1)),        # beta
            pl.BlockSpec((H, tn), lambda i, j: (0, j)),                                     # W column block
            pl.BlockSpec((1, tn), lambda i, j: (0, j)),                                     # bias block
        ]
        out_specs = pl.BlockSpec((tr, tn), lambda i, j: (i, j))
        dim_sem = ("parallel", "parallel")

    cost = pl.CostEstimate(
        flops=2 * R * H * H + 7 * R * H * n_blocks,
        transcendentals=2 * R * n_blocks,                       # sqrt + reciprocal per row (per column block)
        bytes_accessed=R * H * x_item + R * H * out_item + H * H * 2 + 3 * H * 4,
    )

    out2d = pl.pallas_call(
        _make_kernel(tn, n_blocks),
        out_shape=jax.ShapeDtypeStruct((R, H), x.dtype),
        grid_spec=pltpu.PrefetchScalarGridSpec(
            num_scalar_prefetch=0,
            grid=grid,
            in_specs=in_specs,
            out_specs=out_specs,
        ),
        compiler_params=pltpu.CompilerParams(
            dimension_semantics=dim_sem,
            vmem_limit_bytes=vmem_limit,
        ),
        cost_estimate=cost,
    )(x2d, gamma2d, beta2d, w_bf16, b2d)

    return out2d.reshape(B, S, H)


def _reference(x, gamma, beta, w, b):
    """Pure-JAX f32 reference mirroring the PyTorch forward (eval mode)."""
    mean = jnp.mean(x, axis=-1, keepdims=True)
    centered = x - mean
    h = x.shape[-1]
    std = jnp.sqrt(jnp.sum(centered * centered, axis=-1, keepdims=True) / (h - 1))
    normed = gamma * centered / (std + EPS) + beta
    sub = normed @ w + b
    return x + sub


if __name__ == "__main__":
    B, S, H = 2, 8, 32
    key = jax.random.PRNGKey(0)
    kx, kw, kb = jax.random.split(key, 3)

    x = jax.random.normal(kx, (B, S, H), dtype=jnp.float32)

    # Deterministic parameter init (module __init__ shapes):
    # LayerNorm: a_2 = ones(H), b_2 = zeros(H); sublayer Linear(H, H).
    gamma = jnp.ones((H,), dtype=jnp.float32)
    beta = jnp.zeros((H,), dtype=jnp.float32)
    w = jax.random.normal(kw, (H, H), dtype=jnp.float32) * (1.0 / jnp.sqrt(H))
    b = jax.random.normal(kb, (H,), dtype=jnp.float32) * 0.01

    # Weight-load-time bf16 cast (done once, not per call).
    w_bf16 = w.astype(jnp.bfloat16)

    out = residual_skip_connection_with_layernorm(x, gamma, beta, w_bf16, b)
    out = jax.block_until_ready(out)

    ref = _reference(x, gamma, beta, w, b)
    assert out.shape == (B, S, H)
    # bf16 MXU operands + approx EUP reciprocal => looser tolerance vs f32 reference.
    assert jnp.allclose(out, ref, atol=5e-2, rtol=5e-2), "mismatch vs reference"

    print("KERNEL_OK")
</pallas_src>

<mosaic_0001>
module attributes {stable_mosaic.version = 11 : i64} {
  func.func @kernel(%arg0: i32, %arg1: memref<8x32xf32, #tpu.memory_space<vmem>>, %arg2: memref<1x32xf32, #tpu.memory_space<vmem>>, %arg3: memref<1x32xf32, #tpu.memory_space<vmem>>, %arg4: memref<32x32xbf16, #tpu.memory_space<vmem>>, %arg5: memref<1x32xf32, #tpu.memory_space<vmem>>, %arg6: memref<8x32xf32, #tpu.memory_space<vmem>>) attributes {dimension_semantics = [#tpu.dimension_semantics<parallel>], iteration_bounds = array<i64: 2>, scalar_prefetch = 0 : i64, scratch_operands = 0 : i64, tpu.core_type = #tpu.core_type<tc>, window_params = [{transform_indices = @transform_0, window_bounds = array<i64: 8, 32>}, {pipeline_mode = #tpu.pipeline_mode<synchronous>, transform_indices = @transform_1, window_bounds = array<i64: 1, 32>}, {pipeline_mode = #tpu.pipeline_mode<synchronous>, transform_indices = @transform_2, window_bounds = array<i64: 1, 32>}, {pipeline_mode = #tpu.pipeline_mode<synchronous>, transform_indices = @transform_3, window_bounds = array<i64: 32, 32>}, {pipeline_mode = #tpu.pipeline_mode<synchronous>, transform_indices = @transform_4, window_bounds = array<i64: 1, 32>}, {transform_indices = @transform_5, window_bounds = array<i64: 8, 32>}]} {
    %c0 = arith.constant 0 : index
    %c0_0 = arith.constant 0 : index
    %0 = vector.load %arg1[%c0, %c0_0] : memref<8x32xf32, #tpu.memory_space<vmem>>, vector<8x32xf32>
    %cst = arith.constant dense<0.000000e+00> : vector<8xf32>
    %1 = vector.multi_reduction <add>, %0, %cst [1] : vector<8x32xf32> to vector<8xf32>
    %2 = vector.shape_cast %1 : vector<8xf32> to vector<8x1xf32>
    %cst_1 = arith.constant 3.200000e+01 : f32
    %3 = vector.broadcast %cst_1 : f32 to vector<8x1xf32>
    %4 = arith.divf %2, %3 : vector<8x1xf32>
    %5 = vector.broadcast %4 : vector<8x1xf32> to vector<8x32xf32>
    %6 = arith.subf %0, %5 : vector<8x32xf32>
    %7 = arith.mulf %6, %6 : vector<8x32xf32>
    %cst_2 = arith.constant dense<0.000000e+00> : vector<8xf32>
    %8 = vector.multi_reduction <add>, %7, %cst_2 [1] : vector<8x32xf32> to vector<8xf32>
    %9 = vector.shape_cast %8 : vector<8xf32> to vector<8x1xf32>
    %cst_3 = arith.constant 0.0322580636 : f32
    %10 = vector.broadcast %cst_3 : f32 to vector<8x1xf32>
    %11 = arith.mulf %9, %10 : vector<8x1xf32>
    %12 = math.sqrt %11 : vector<8x1xf32>
    %cst_4 = arith.constant 9.99999997E-7 : f32
    %13 = vector.broadcast %cst_4 : f32 to vector<8x1xf32>
    %14 = arith.addf %12, %13 : vector<8x1xf32>
    %15 = tpu.reciprocal %14 {approx = true} : vector<8x1xf32> -> vector<8x1xf32>
    %c0_5 = arith.constant 0 : index
    %c0_6 = arith.constant 0 : index
    %16 = vector.load %arg2[%c0_5, %c0_6] : memref<1x32xf32, #tpu.memory_space<vmem>>, vector<1x32xf32>
    %17 = vector.broadcast %16 : vector<1x32xf32> to vector<8x32xf32>
    %18 = vector.broadcast %15 : vector<8x1xf32> to vector<8x32xf32>
    %19 = arith.mulf %17, %18 : vector<8x32xf32>
    %20 = arith.mulf %6, %19 : vector<8x32xf32>
    %c0_7 = arith.constant 0 : index
    %c0_8 = arith.constant 0 : index
    %21 = vector.load %arg3[%c0_7, %c0_8] : memref<1x32xf32, #tpu.memory_space<vmem>>, vector<1x32xf32>
    %22 = vector.broadcast %21 : vector<1x32xf32> to vector<8x32xf32>
    %23 = arith.addf %20, %22 : vector<8x32xf32>
    %24 = arith.truncf %23 : vector<8x32xf32> to vector<8x32xbf16>
    %c0_9 = arith.constant 0 : index
    %c0_10 = arith.constant 0 : index
    %25 = vector.load %arg4[%c0_9, %c0_10] : memref<32x32xbf16, #tpu.memory_space<vmem>>, vector<32x32xbf16>
    %cst_11 = arith.constant dense<0.000000e+00> : vector<8x32xf32>
    %26 = tpu.matmul %24, %25, %cst_11 {dimension_numbers = #tpu.dot_dimension_numbers<[1], [0], [0], [1], [0, 0, 1, 1], [], []>} : vector<8x32xbf16>, vector<32x32xbf16>, vector<8x32xf32> -> vector<8x32xf32>
    %27 = arith.addf %0, %26 : vector<8x32xf32>
    %c0_12 = arith.constant 0 : index
    %c0_13 = arith.constant 0 : index
    %28 = vector.load %arg5[%c0_12, %c0_13] : memref<1x32xf32, #tpu.memory_space<vmem>>, vector<1x32xf32>
    %29 = vector.broadcast %28 : vector<1x32xf32> to vector<8x32xf32>
    %30 = arith.addf %27, %29 : vector<8x32xf32>
    %c0_14 = arith.constant 0 : index
    %c0_15 = arith.constant 0 : index
    %31 = vector.load %arg6[%c0_14, %c0_15] : memref<8x32xf32, #tpu.memory_space<vmem>>, vector<8x32xf32>
    tpu.vector_store %arg6[%c0_14, %c0_15], %30 {strides = array<i32>} : memref<8x32xf32, #tpu.memory_space<vmem>>, vector<8x32xf32>,
    return
  }
  func.func @transform_0(%arg0: i32) -> (i32, i32) {
    %c0_i32 = arith.constant 0 : i32
    %c0_i32_0 = arith.constant 0 : i32
    return %arg0, %c0_i32 : i32, i32
  }
  func.func @transform_1(%arg0: i32) -> (i32, i32) {
    %c0_i32 = arith.constant 0 : i32
    %c0_i32_0 = arith.constant 0 : i32
    %c0_i32_1 = arith.constant 0 : i32
    return %c0_i32, %c0_i32_0 : i32, i32
  }
  func.func @transform_2(%arg0: i32) -> (i32, i32) {
    %c0_i32 = arith.constant 0 : i32
    %c0_i32_0 = arith.constant 0 : i32
    %c0_i32_1 = arith.constant 0 : i32
    return %c0_i32, %c0_i32_0 : i32, i32
  }
  func.func @transform_3(%arg0: i32) -> (i32, i32) {
    %c0_i32 = arith.constant 0 : i32
    %c0_i32_0 = arith.constant 0 : i32
    %c0_i32_1 = arith.constant 0 : i32
    return %c0_i32, %c0_i32_0 : i32, i32
  }
  func.func @transform_4(%arg0: i32) -> (i32, i32) {
    %c0_i32 = arith.constant 0 : i32
    %c0_i32_0 = arith.constant 0 : i32
    %c0_i32_1 = arith.constant 0 : i32
    return %c0_i32, %c0_i32_0 : i32, i32
  }
  func.func @transform_5(%arg0: i32) -> (i32, i32) {
    %c0_i32 = arith.constant 0 : i32
    %c0_i32_0 = arith.constant 0 : i32
    return %arg0, %c0_i32 : i32, i32
  }
}

</mosaic_0001>

<llo_original>
// kernel: tpu_custom_call.1
$region0: #{tpu_custom_call.1}
  #allocation0 [shape = 'u32[]', space=smem, size = 0x4, offset = 0x4, fixed_abs, tag = 'smem constant byte address 0x4 - core index']
  #allocation1 [shape = 'u32[144,128]{1,0:T(1,128)}', space=vmem, size = 0x12000, scoped, tag = 'internal scratch']
  %s0 = inlined_call_operand.hbm [shape: f32[16,32], index: 0, kind: input, shape index: {}]
  %s1 = inlined_call_operand.vmem [shape: f32[1,32], index: 1, kind: input, shape index: {}]
  %s2 = inlined_call_operand.vmem [shape: f32[1,32], index: 2, kind: input, shape index: {}]
  %s3 = inlined_call_operand.hbm [shape: bf16[32,32], index: 3, kind: input, shape index: {}]
  %s4 = inlined_call_operand.vmem [shape: f32[1,32], index: 4, kind: input, shape index: {}]
  %s5 = inlined_call_operand.hbm [shape: f32[16,32], index: 5, kind: output, shape index: {}]
  %s6 = sld [smem:[#allocation0]]
  $region61: #{tpu_custom_call.1} parent=0
    _
  %s8 = ssub.s32 1, %s6
  %s9 = scalar_select 0, %s8, %s6
  $region1: #{tpu_custom_call.1} parent=0
    #allocation2 [shape = 'u8[8192]{0}', space=vmem, size = 0x2000, scoped, tag = 'input window, operand 0']
    #allocation3 [shape = 's32[2]{0}', space=sflag, size = 0x8, scoped, tag = 'scoped memory for tpu_custom_call.1']
    #allocation4 [shape = 's32[2]{0}', space=sflag, size = 0x8, scoped, tag = 'scoped memory for tpu_custom_call.1']
    #allocation5 [shape = 'u8[8192]{0}', space=vmem, size = 0x2000, scoped, tag = 'input window, operand 3, single buffered']
    #allocation6 [shape = 's32[1]{0}', space=sflag, size = 0x4, scoped, tag = 'scoped memory for tpu_custom_call.1']
    #allocation7 [shape = 'u8[8192]{0}', space=vmem, size = 0x2000, scoped, tag = 'output window, operand 0']
    %10 = vsyncpa [#allocation3], 0
    %s11 = scalar_lea.sflag [#allocation3], 1
    %12 = vsyncpa %s11, 0
    %13 = vsyncpa [#allocation6], 0
    %14 = vsyncpa [#allocation4], 0
    %s15 = scalar_lea.sflag [#allocation4], 1
    %16 = vsyncpa %s15, 0
    loop: start=0, step=1, limit=4
    $region2: #{tpu_custom_call.1} parent=1 // loop_pre_header
      _
    $region3: #{tpu_custom_call.1} parent=1 // loop_header
      %s18 = sphi 0, %s22
      %p19 = scmp.ge.s32.totalorder %s18, 4
      %s28 = sphi 0, %s30
      %s31 = sphi 0, %s28
      %s32 = sphi 0, %s31
      %s48 = sphi 0, %s32
      %s52 = sphi 0, %s52
      %s54 = sphi 0, %s52
      %s55 = sphi 0, %s54
      %s69 = sphi 0, %s55
      %s73 = sphi 0, %s73
      %s75 = sphi 0, %s73
      %s76 = sphi 0, %s75
      %s90 = sphi 0, %s76
      %s94 = sphi 0, %s94
      %s96 = sphi 0, %s94
      %s97 = sphi 0, %s96
      %s111 = sphi 0, %s97
      %s115 = sphi 0, %s115
      %s117 = sphi 0, %s115
      %s118 = sphi 0, %s117
      %s132 = sphi 0, %s118
      %s138 = sphi 0, %s140
      %s141 = sphi 0, %s138
      %s142 = sphi 0, %s141
      %s158 = sphi 0, %s142
    $region4: #{tpu_custom_call.1} parent=1 // loop_header_branch
      %21 = sbr.rel (%p19) target = $region8
    $region5: #{tpu_custom_call.1} parent=1 // loop_body
      %s23 = ssub.s32 %s18, 1
      %s24 = ssub.s32 %s18, 2
      %s25 = sadd.s32 %s18, 1
      %s26 = ssub.s32 %s18, %s25
      %p27 = scmp.eq.s32.totalorder %s26, 0
      %s29 = sadd.s32 %s28, 1
      %s30 = scalar_select %p27, %s28, %s29
      %p33 = pneg %p27
      %p34 = scmp.eq.s32.totalorder %s18, 1
      %p35 = por %p33, %p34
      %p36 = scmp.ne.s32.totalorder %s28, %s31
      %p37 = scmp.eq.s32.totalorder %s18, 0
      %p38 = por %p36, %p37
      %p39 = scmp.ne.s32.totalorder %s28, %s31
      %p40 = scmp.eq.s32.totalorder %s23, 1
      %p41 = por %p39, %p40
      %p42 = scmp.ne.s32.totalorder %s31, %s32
      %p43 = scmp.eq.s32.totalorder %s23, 0
      %p44 = por %p42, %p43
      %p45 = scmp.ne.s32.totalorder %s31, %s32
      %p46 = scmp.eq.s32.totalorder %s24, 1
      %p47 = por %p45, %p46
      %p49 = scmp.ne.s32.totalorder %s32, %s48
      %p50 = scmp.eq.s32.totalorder %s24, 0
      %p51 = por %p49, %p50
      %s53 = sadd.s32 %s52, 1
      %p56 = scmp.eq.s32.totalorder %s18, 1
      %p57 = scmp.ne.s32.totalorder %s52, %s54
      %p58 = scmp.eq.s32.totalorder %s18, 0
      %p59 = por %p57, %p58
      %p60 = scmp.ne.s32.totalorder %s52, %s54
      %p61 = scmp.eq.s32.totalorder %s23, 1
      %p62 = por %p60, %p61
      %p63 = scmp.ne.s32.totalorder %s54, %s55
      %p64 = scmp.eq.s32.totalorder %s23, 0
      %p65 = por %p63, %p64
      %p66 = scmp.ne.s32.totalorder %s54, %s55
      %p67 = scmp.eq.s32.totalorder %s24, 1
      %p68 = por %p66, %p67
      %p70 = scmp.ne.s32.totalorder %s55, %s69
      %p71 = scmp.eq.s32.totalorder %s24, 0
      %p72 = por %p70, %p71
      %s74 = sadd.s32 %s73, 1
      %p77 = scmp.eq.s32.totalorder %s18, 1
      %p78 = scmp.ne.s32.totalorder %s73, %s75
      %p79 = scmp.eq.s32.totalorder %s18, 0
      %p80 = por %p78, %p79
      %p81 = scmp.ne.s32.totalorder %s73, %s75
      %p82 = scmp.eq.s32.totalorder %s23, 1
      %p83 = por %p81, %p82
      %p84 = scmp.ne.s32.totalorder %s75, %s76
      %p85 = scmp.eq.s32.totalorder %s23, 0
      %p86 = por %p84, %p85
      %p87 = scmp.ne.s32.totalorder %s75, %s76
      %p88 = scmp.eq.s32.totalorder %s24, 1
      %p89 = por %p87, %p88
      %p91 = scmp.ne.s32.totalorder %s76, %s90
      %p92 = scmp.eq.s32.totalorder %s24, 0
      %p93 = por %p91, %p92
      %s95 = sadd.s32 %s94, 1
      %p98 = scmp.eq.s32.totalorder %s18, 1
      %p99 = scmp.ne.s32.totalorder %s94, %s96
      %p100 = scmp.eq.s32.totalorder %s18, 0
      %p101 = por %p99, %p100
      %p102 = scmp.ne.s32.totalorder %s94, %s96
      %p103 = scmp.eq.s32.totalorder %s23, 1
      %p104 = por %p102, %p103
      %p105 = scmp.ne.s32.totalorder %s96, %s97
      %p106 = scmp.eq.s32.totalorder %s23, 0
      %p107 = por %p105, %p106
      %p108 = scmp.ne.s32.totalorder %s96, %s97
      %p109 = scmp.eq.s32.totalorder %s24, 1
      %p110 = por %p108, %p109
      %p112 = scmp.ne.s32.totalorder %s97, %s111
      %p113 = scmp.eq.s32.totalorder %s24, 0
      %p114 = por %p112, %p113
      %s116 = sadd.s32 %s115, 1
      %p119 = scmp.eq.s32.totalorder %s18, 1
      %p120 = scmp.ne.s32.totalorder %s115, %s117
      %p121 = scmp.eq.s32.totalorder %s18, 0
      %p122 = por %p120, %p121
      %p123 = scmp.ne.s32.totalorder %s115, %s117
      %p124 = scmp.eq.s32.totalorder %s23, 1
      %p125 = por %p123, %p124
      %p126 = scmp.ne.s32.totalorder %s117, %s118
      %p127 = scmp.eq.s32.totalorder %s23, 0
      %p128 = por %p126, %p127
      %p129 = scmp.ne.s32.totalorder %s117, %s118
      %p130 = scmp.eq.s32.totalorder %s24, 1
      %p131 = por %p129, %p130
      %p133 = scmp.ne.s32.totalorder %s118, %s132
      %p134 = scmp.eq.s32.totalorder %s24, 0
      %p135 = por %p133, %p134
      %s136 = ssub.s32 %s18, %s25
      %p137 = scmp.eq.s32.totalorder %s136, 0
      %s139 = sadd.s32 %s138, 1
      %s140 = scalar_select %p137, %s138, %s139
      %p143 = pneg %p137
      %p144 = scmp.eq.s32.totalorder %s18, 1
      %p145 = por %p143, %p144
      %p146 = scmp.ne.s32.totalorder %s138, %s141
      %p147 = scmp.eq.s32.totalorder %s18, 0
      %p148 = por %p146, %p147
      %p149 = scmp.ne.s32.totalorder %s138, %s141
      %p150 = scmp.eq.s32.totalorder %s23, 1
      %p151 = por %p149, %p150
      %p152 = scmp.ne.s32.totalorder %s141, %s142
      %p153 = scmp.eq.s32.totalorder %s23, 0
      %p154 = por %p152, %p153
      %p155 = scmp.ne.s32.totalorder %s141, %s142
      %p156 = scmp.eq.s32.totalorder %s24, 1
      %p157 = por %p155, %p156
      %p159 = scmp.ne.s32.totalorder %s142, %s158
      %p160 = scmp.eq.s32.totalorder %s24, 0
      %p161 = por %p159, %p160
      %p162 = scmp.le.s32.totalorder 1, %s18
      %p163 = scmp.lt.s32.totalorder %s18, 3
      %p164 = pnand %p162, %p163
      %p165 = pneg %p164
      // Predicated region
      $region9: #{tpu_custom_call.1} parent=5 // pred_check
        _
      $region10: #{tpu_custom_call.1} parent=5 // pred_check_branch
        %167 = sbr.rel (%p164) target = $region12
      $region11: #{tpu_custom_call.1} parent=5 // pred_region
        %s168 = ssub.s32 %s18, 1
        // Predicated region
        $region13: #{tpu_custom_call.1} parent=11 // pred_check
          %p169 = pneg %p65
        $region14: #{tpu_custom_call.1} parent=11 // pred_check_branch
          %171 = sbr.rel (%p169) target = $region16
        $region15: #{tpu_custom_call.1} parent=11 // pred_region
          _
        $region16: #{tpu_custom_call.1} parent=11 // pred_fallthru
          _
        // Predicated region
        $region17: #{tpu_custom_call.1} parent=11 // pred_check
          %p172 = pneg %p86
        $region18: #{tpu_custom_call.1} parent=11 // pred_check_branch
          %174 = sbr.rel (%p172) target = $region20
        $region19: #{tpu_custom_call.1} parent=11 // pred_region
          _
        $region20: #{tpu_custom_call.1} parent=11 // pred_fallthru
          _
        // Predicated region
        $region21: #{tpu_custom_call.1} parent=11 // pred_check
          %p175 = pneg %p107
        $region22: #{tpu_custom_call.1} parent=11 // pred_check_branch
          %177 = sbr.rel (%p175) target = $region24
        $region23: #{tpu_custom_call.1} parent=11 // pred_region
          %s179 = ssub.s32 256, 256
          %180 = vsyncadd [#allocation6], %s179
          %s181 = sshll.u32 [#allocation5], 4
          %s182 = int_to_ptr.vmem [resolvable:$true] %s181
          %187 = dma.hbm_to_vmem [thread:$0]  %s3, 256, %s182, [#allocation6], 64, 64, 4
        $region24: #{tpu_custom_call.1} parent=11 // pred_fallthru
          _
        // Predicated region
        $region25: #{tpu_custom_call.1} parent=11 // pred_check
          %p188 = pneg %p128
        $region26: #{tpu_custom_call.1} parent=11 // pred_check_branch
          %190 = sbr.rel (%p188) target = $region28
        $region27: #{tpu_custom_call.1} parent=11 // pred_region
          _
        $region28: #{tpu_custom_call.1} parent=11 // pred_fallthru
          _
      $region12: #{tpu_custom_call.1} parent=5 // pred_fallthru
        _
      %p191 = scmp.lt.s32.totalorder %s18, 2
      // Predicated region
      $region29: #{tpu_custom_call.1} parent=5 // pred_check
        %p192 = pneg %p191
      $region30: #{tpu_custom_call.1} parent=5 // pred_check_branch
        %194 = sbr.rel (%p192) target = $region32
      $region31: #{tpu_custom_call.1} parent=5 // pred_region
        // Predicated region
        $region33: #{tpu_custom_call.1} parent=31 // pred_check
          %p195 = pneg %p38
        $region34: #{tpu_custom_call.1} parent=31 // pred_check_branch
          %197 = sbr.rel (%p195) target = $region36
        $region35: #{tpu_custom_call.1} parent=31 // pred_region
          %s198 = sand.u32 %s28, 1
          %s199 = scalar_lea.sflag [#allocation3], %s198
          %s200 = sand.u32 %s28, 1
          %s201 = smul.addr %s200, 8
          %s202 = scalar_lea.vmem [#allocation2], %s201
          %s204 = ssub.s32 128, 128
          %205 = vsyncadd %s199, %s204
          %s206 = smul.addr %s18, 128
          %s207 = scalar_lea.hbm %s0, %s206
          %s209 = sshll.u32 %s202, 4
          %s210 = int_to_ptr.vmem [resolvable:$true] %s209
          %212 = dma.hbm_to_vmem [thread:$0]  %s207, 128, %s210, %s199
        $region36: #{tpu_custom_call.1} parent=31 // pred_fallthru
          _
      $region32: #{tpu_custom_call.1} parent=5 // pred_fallthru
        _
      %p213 = scmp.le.s32.totalorder 1, %s18
      %p214 = scmp.lt.s32.totalorder %s18, 3
      %p215 = pnand %p213, %p214
      %p216 = pneg %p215
      // Predicated region
      $region37: #{tpu_custom_call.1} parent=5 // pred_check
        _
      $region38: #{tpu_custom_call.1} parent=5 // pred_check_branch
        %218 = sbr.rel (%p215) target = $region40
      $region39: #{tpu_custom_call.1} parent=5 // pred_region
        %s219 = ssub.s32 %s18, 1
        %s220 = sand.u32 %s31, 1
        %s221 = scalar_lea.sflag [#allocation3], %s220
        %s222 = sand.u32 %s31, 1
        %s223 = smul.addr %s222, 8
        %s224 = scalar_lea.vmem [#allocation2], %s223
        // Predicated region
        $region41: #{tpu_custom_call.1} parent=39 // pred_check
          %p225 = pneg %p44
        $region42: #{tpu_custom_call.1} parent=39 // pred_check_branch
          %227 = sbr.rel (%p225) target = $region44
        $region43: #{tpu_custom_call.1} parent=39 // pred_region
          %228 = dma.done %s221, 128
        $region44: #{tpu_custom_call.1} parent=39 // pred_fallthru
          _
        // Predicated region
        $region45: #{tpu_custom_call.1} parent=39 // pred_check
          %p229 = pneg %p107
        $region46: #{tpu_custom_call.1} parent=39 // pred_check_branch
          %231 = sbr.rel (%p229) target = $region48
        $region47: #{tpu_custom_call.1} parent=39 // pred_region
          %232 = dma.done [#allocation6], 256
        $region48: #{tpu_custom_call.1} parent=39 // pred_fallthru
          _
        %s233 = sand.u32 %s31, 1
        %s234 = scalar_lea.sflag [#allocation3], %s233
        %s235 = sand.u32 %s31, 1
        %s236 = smul.addr %s235, 8
        %s237 = scalar_lea.vmem [#allocation2], %s236
        %p238 = pneg %p44
        %p239 = pneg %p41
        %p240 = pneg %p65
        %p241 = pneg %p62
        %p242 = pneg %p86
        %p243 = pneg %p83
        %p244 = pneg %p107
        %p245 = pneg %p104
        %p246 = pneg %p128
        %p247 = pneg %p125
        %p248 = pneg %p154
        %p249 = pneg %p151
        %s250 = sand.u32 %s141, 1
        %s251 = scalar_lea.sflag [#allocation4], %s250
        %s252 = sand.u32 %s141, 1
        %s253 = smul.addr %s252, 8
        %s254 = scalar_lea.vmem [#allocation7], %s253
        %v256 = vld [vmem:[%s224] sm:$0xff]
        %vm257 = vcmask 261120
        %v258 = vsel %vm257, %v256, 0.0
        %259 = vadd.xlane.f32.xlu0 %v258
        %v260 = vpop.xlane.xlu0 %259
        %v261 = vrcp.pop 32.0
        %v262 = vmul.f32 %v260, %v261
        %v263 = vsub.f32 %v256, %v262
        %v264 = vmul.f32 %v263, %v263
        %v265 = vsel %vm257, %v264, 0.0
        %266 = vadd.xlane.f32.xlu0 %v265
        %v267 = vpop.xlane.xlu0 %266
        %v268 = vmul.f32 %v267, 0.032258064
        %v269 = vrsqrt.pop %v268
        %v270 = vmul.f32 %v268, %v269
        %vm271 = vcmp.eq.f32.partialorder %v268, inf
        %v272 = vsel %vm271, %v268, %v270
        %vm273 = vcmp.eq.f32.partialorder %v268, 0.0
        %v274 = vand.u32 %v268, 2147483648
        %v275 = vsel %vm273, %v274, %v272
        %v276 = vadd.f32 %v275, 1e-06
        %v277 = vrcp.pop %v276
        %v278 = vld [vmem:[%s1] sm:$0x1]
        %v280 = vlaneseq
        %v281 = vshrl.u32 %v280, 7
        %v282 = vsub.s32 0, %v281
        %v283 = vrot.slane %v278, %v282
        %v285 = vmul.f32 %v283, %v277
        %v286 = vmul.f32 %v263, %v285
        %v287 = vld [vmem:[%s2] sm:$0x1]
        %v289 = vlaneseq
        %v290 = vshrl.u32 %v289, 7
        %v291 = vsub.s32 0, %v290
        %v292 = vrot.slane %v287, %v291
        %v294 = vadd.f32 %v286, %v292
        %v295 = vpack.c.bf16 %v294, %v294
        %v296 = vld [vmem:[#allocation5] sm:$0xf]
        %v297 = vld [vmem:[#allocation5 + $0x4] sm:$0xf]
        %v298 = vld [vmem:[#allocation5 + $0x8] sm:$0xf]
        %v299 = vld [vmem:[#allocation5 + $0xc] sm:$0xf]
        %v304 = vunpack.c.l.b16 %v296
        %v305 = vunpack.c.l.b16 %v297
        %v306 = vunpack.c.l.b16 %v298
        %v307 = vunpack.c.l.b16 %v299
        %v308 = vpack.c.b16 %v305, %v304
        %v309 = vpack.c.b16 %v307, %v306
        %v313 = vsel %vm257, %v295, 0
        %315 = vmatprep.subr.bf16.mxu0 0
        %316 = vmatpush1.bf16.msra.mxu0 %v308
        %317 = vmatprep.subr.bf16.mxu0 0
        %318 = vmatpush1.bf16.msra.mxu0 %v309
        %319 = vmatprep.subr.bf16.mxu0 0
        %320 = vmatpush1.bf16.msra.mxu0 0
        %321 = vmatprep.subr.bf16.mxu0 0
        %322 = vmatpush1.bf16.msra.mxu0 0
        %323 = vmatprep.subr.bf16.mxu0 0
        %324 = vmatpush1.bf16.msra.mxu0 0
        %325 = vmatprep.subr.bf16.mxu0 0
        %326 = vmatpush1.bf16.msra.mxu0 0
        %327 = vmatprep.subr.bf16.mxu0 0
        %328 = vmatpush1.bf16.msra.mxu0 0
        %329 = vmatprep.subr.bf16.mxu0 0
        %330 = vmatpush1.bf16.msra.mxu0 0
        %331 = vmatprep.subr.bf16.mxu0 0
        %332 = vmatpush1.bf16.msra.mxu0 0
        %333 = vmatprep.subr.bf16.mxu0 0
        %334 = vmatpush1.bf16.msra.mxu0 0
        %335 = vmatprep.subr.bf16.mxu0 0
        %336 = vmatpush1.bf16.msra.mxu0 0
        %337 = vmatprep.subr.bf16.mxu0 0
        %338 = vmatpush1.bf16.msra.mxu0 0
        %339 = vmatprep.subr.bf16.mxu0 0
        %340 = vmatpush1.bf16.msra.mxu0 0
        %341 = vmatprep.subr.bf16.mxu0 0
        %342 = vmatpush1.bf16.msra.mxu0 0
        %343 = vmatprep.subr.bf16.mxu0 0
        %344 = vmatpush1.bf16.msra.mxu0 0
        %345 = vmatprep.subr.bf16.mxu0 0
        %346 = vmatpush1.bf16.msra.mxu0 0
        %347 = vmatprep.mubr.bf16.mxu0 0
        %348 = vmatmul.mubr.bf16.gmra.mrb[0].mxu0 %v313
        %v349 = vpop.f32.mrb[0].mxu0
        %v350 = vadd.f32 0.0, %v349
        %v351 = vpop.f32.mrb[0].mxu0
        %v352 = vpop.f32.mrb[0].mxu0
        %v353 = vpop.f32.mrb[0].mxu0
        %354 = vdwg.mxu0
        %v355 = vadd.f32 %v256, %v350
        %v356 = vld [vmem:[%s4] sm:$0x1]
        %v358 = vlaneseq
        %v359 = vshrl.u32 %v358, 7
        %v360 = vsub.s32 0, %v359
        %v361 = vrot.slane %v356, %v360
        %v363 = vadd.f32 %v355, %v361
        %364 = vst.msk [vmem:[%s254] sm:$0xff] %vm257, %v363
        %s365 = sand.u32 %s141, 1
        %s366 = scalar_lea.sflag [#allocation4], %s365
        %s367 = sand.u32 %s141, 1
        %s368 = smul.addr %s367, 8
        %s369 = scalar_lea.vmem [#allocation7], %s368
        // Predicated region
        $region49: #{tpu_custom_call.1} parent=39 // pred_check
          %p370 = pneg %p151
        $region50: #{tpu_custom_call.1} parent=39 // pred_check_branch
          %372 = sbr.rel (%p370) target = $region52
        $region51: #{tpu_custom_call.1} parent=39 // pred_region
          %s374 = ssub.s32 128, 128
          %375 = vsyncadd %s366, %s374
          %s376 = smul.addr %s23, 128
          %s377 = scalar_lea.hbm %s5, %s376
          %s379 = sshll.u32 %s369, 4
          %s380 = int_to_ptr.vmem [resolvable:$true] %s379
          %382 = dma.vmem_to_hbm [thread:$0]  %s380, 128, %s377, %s366
        $region52: #{tpu_custom_call.1} parent=39 // pred_fallthru
          _
      $region40: #{tpu_custom_call.1} parent=5 // pred_fallthru
        _
      %p383 = scmp.le.s32.totalorder 2, %s18
      // Predicated region
      $region53: #{tpu_custom_call.1} parent=5 // pred_check
        %p384 = pneg %p383
      $region54: #{tpu_custom_call.1} parent=5 // pred_check_branch
        %386 = sbr.rel (%p384) target = $region56
      $region55: #{tpu_custom_call.1} parent=5 // pred_region
        %s387 = ssub.s32 %s18, 2
        // Predicated region
        $region57: #{tpu_custom_call.1} parent=55 // pred_check
          %p388 = pneg %p157
        $region58: #{tpu_custom_call.1} parent=55 // pred_check_branch
          %390 = sbr.rel (%p388) target = $region60
        $region59: #{tpu_custom_call.1} parent=55 // pred_region
          %s391 = sand.u32 %s142, 1
          %s392 = scalar_lea.sflag [#allocation4], %s391
          %s393 = sand.u32 %s142, 1
          %s394 = smul.addr %s393, 8
          %s395 = scalar_lea.vmem [#allocation7], %s394
          %396 = dma.done %s392, 128
        $region60: #{tpu_custom_call.1} parent=55 // pred_fallthru
          _
      $region56: #{tpu_custom_call.1} parent=5 // pred_fallthru
        _
    $region6: #{tpu_custom_call.1} parent=1 // loop_footer
      %s22 = sadd.s32 1, %s18
    $region7: #{tpu_custom_call.1} parent=1 // loop_footer_branch
      %17 = sbr.rel target = $region3
    $region8: #{tpu_custom_call.1} parent=1 // loop_exit
      _
    %397 = vsyncpa [#allocation3], 1
    %s398 = scalar_lea.sflag [#allocation3], 1
    %399 = vsyncpa %s398, 1
    %400 = vsyncpa [#allocation6], 1
    %401 = vsyncpa [#allocation4], 1
    %s402 = scalar_lea.sflag [#allocation4], 1
    %403 = vsyncpa %s402, 1

</llo_original>
